<compile_context>
chip_gen: v6e
topology: v6e:2x2x1
jax: 0.10.0
libtpu: 0.0.40
codegen_flags: <defaults>
</compile_context>

<pallas_src>
import math
import functools

import jax
import jax.numpy as jnp
from jax.experimental import pallas as pl
from jax.experimental.pallas import tpu as pltpu


def _pos_enc_train_kernel(x_ref, pe_ref, mask_ref, o_ref):
    # x_ref / mask_ref / o_ref: (TS, B, D) in VMEM; pe_ref: (TS, D) in VMEM.
    y = x_ref[...] + pe_ref[...][:, None, :]          # broadcast pe over batch
    o_ref[...] = (y * mask_ref[...]).astype(o_ref.dtype)


def make_pe_table(max_len, d_model, dtype=jnp.float32):
    """Deterministic sinusoidal table, identical to the PyTorch __init__ math."""
    position = jnp.arange(0, max_len, dtype=jnp.float32)[:, None]          # (L, 1)
    div_term = jnp.exp(
        jnp.arange(0, d_model, 2, dtype=jnp.float32) * (-math.log(10000.0) / d_model)
    )                                                                       # (D/2,)
    pe = jnp.zeros((max_len, d_model), dtype=jnp.float32)
    pe = pe.at[:, 0::2].set(jnp.sin(position * div_term))
    pe = pe.at[:, 1::2].set(jnp.cos(position * div_term))
    # matches pe.unsqueeze(0).transpose(0, 1) -> (max_len, 1, d_model)
    return pe[:, None, :].astype(dtype)


def _dropout_mask(key, shape, p, dtype):
    """Pre-scaled dropout mask: kept elements -> 1/(1-p), dropped -> 0."""
    keep = jax.random.bernoulli(key, 1.0 - p, shape)
    return keep.astype(dtype) * jnp.asarray(1.0 / (1.0 - p), dtype)


def _pick_tile_s(S, B, D, itemsize, block_s=None, target_bytes=2 * 1024 * 1024):
    """Pick a seq-tile size: ~target_bytes per x tile, sublane-aligned for the pe block."""
    if block_s is not None:
        ts = min(S, block_s)
    else:
        ts = max(1, target_bytes // max(1, B * D * itemsize))
        ts = min(S, ts)
    if ts < S:
        ts = max(8, (ts // 8) * 8)   # keep pe block's second-to-last dim 8-aligned
        ts = min(ts, S)
    return ts


def position_encoder(x, pe, key, *, p=0.1, training=False, block_s=None):
    """x: (S, B, D); pe: (max_len, 1, D); key: jax PRNG key for the dropout mask."""
    S, B, D = x.shape
    pe_sd = pe[:S, 0, :].astype(x.dtype)               # (S, D)

    if (not training) or p == 0.0:
        # Inference / no-dropout path: let XLA fuse the broadcast add with neighbors.
        return x + pe_sd[:, None, :]

    mask = _dropout_mask(key, x.shape, p, x.dtype)

    itemsize = jnp.dtype(x.dtype).itemsize
    ts = _pick_tile_s(S, B, D, itemsize, block_s=block_s)
    grid = (pl.cdiv(S, ts),)

    cost = pl.CostEstimate(
        flops=2 * S * B * D,
        transcendentals=0,
        bytes_accessed=(3 * S * B * D + S * D) * itemsize,   # x, mask, out + pe
    )

    return pl.pallas_call(
        _pos_enc_train_kernel,
        out_shape=jax.ShapeDtypeStruct(x.shape, x.dtype),
        grid=grid,
        in_specs=[
            pl.BlockSpec((ts, B, D), lambda i: (i, 0, 0)),   # x tile
            pl.BlockSpec((ts, D), lambda i: (i, 0)),         # pe tile (broadcast in-kernel)
            pl.BlockSpec((ts, B, D), lambda i: (i, 0, 0)),   # pre-scaled dropout mask
        ],
        out_specs=pl.BlockSpec((ts, B, D), lambda i: (i, 0, 0)),
        compiler_params=pltpu.CompilerParams(
            dimension_semantics=("parallel",),               # shard seq tiles across TCs (v7x)
        ),
        cost_estimate=cost,
    )(x, pe_sd, mask)


if __name__ == "__main__":
    S, B, D = 16, 2, 32          # seq_len, batch, d_model (small demo shapes)
    MAX_LEN = 64
    DROPOUT_P = 0.1

    key = jax.random.PRNGKey(0)
    kx, kdrop = jax.random.split(key)
    x = jax.random.normal(kx, (S, B, D), dtype=jnp.float32)
    pe = make_pe_table(MAX_LEN, D)

    # eval mode (dropout = identity): plain fused add, must match reference exactly
    out_eval = jax.block_until_ready(
        position_encoder(x, pe, kdrop, p=DROPOUT_P, training=False))
    ref_eval = x + pe[:S]
    assert out_eval.shape == x.shape and out_eval.dtype == x.dtype
    assert jnp.allclose(out_eval, ref_eval, atol=1e-6), "eval-mode mismatch"

    # training mode: Pallas kernel, tiled over S with grid=(2,) (block_s=8)
    out_train = jax.block_until_ready(
        position_encoder(x, pe, kdrop, p=DROPOUT_P, training=True, block_s=8))
    mask_ref = _dropout_mask(kdrop, x.shape, DROPOUT_P, x.dtype)
    ref_train = (x + pe[:S]) * mask_ref
    assert out_train.shape == x.shape and out_train.dtype == x.dtype
    assert jnp.allclose(out_train, ref_train, atol=1e-5), "training-mode mismatch"

    print("KERNEL_OK")
</pallas_src>

<mosaic_0001>
module attributes {stable_mosaic.version = 11 : i64} {
  func.func @_pos_enc_train_kernel(%arg0: i32, %arg1: memref<8x2x32xf32, #tpu.memory_space<vmem>>, %arg2: memref<8x32xf32, #tpu.memory_space<vmem>>, %arg3: memref<8x2x32xf32, #tpu.memory_space<vmem>>, %arg4: memref<8x2x32xf32, #tpu.memory_space<vmem>>) attributes {dimension_semantics = [#tpu.dimension_semantics<parallel>], iteration_bounds = array<i64: 2>, scalar_prefetch = 0 : i64, scratch_operands = 0 : i64, tpu.core_type = #tpu.core_type<tc>, window_params = [{transform_indices = @transform_0, window_bounds = array<i64: 8, 2, 32>}, {transform_indices = @transform_1, window_bounds = array<i64: 8, 32>}, {transform_indices = @transform_2, window_bounds = array<i64: 8, 2, 32>}, {transform_indices = @transform_3, window_bounds = array<i64: 8, 2, 32>}]} {
    %c0 = arith.constant 0 : index
    %c0_0 = arith.constant 0 : index
    %c0_1 = arith.constant 0 : index
    %0 = vector.load %arg1[%c0, %c0_0, %c0_1] : memref<8x2x32xf32, #tpu.memory_space<vmem>>, vector<8x2x32xf32>
    %c0_2 = arith.constant 0 : index
    %c0_3 = arith.constant 0 : index
    %1 = vector.load %arg2[%c0_2, %c0_3] : memref<8x32xf32, #tpu.memory_space<vmem>>, vector<8x32xf32>
    %2 = vector.shape_cast %1 : vector<8x32xf32> to vector<8x1x32xf32>
    %3 = vector.broadcast %2 : vector<8x1x32xf32> to vector<8x2x32xf32>
    %4 = arith.addf %0, %3 : vector<8x2x32xf32>
    %c0_4 = arith.constant 0 : index
    %c0_5 = arith.constant 0 : index
    %c0_6 = arith.constant 0 : index
    %5 = vector.load %arg3[%c0_4, %c0_5, %c0_6] : memref<8x2x32xf32, #tpu.memory_space<vmem>>, vector<8x2x32xf32>
    %6 = arith.mulf %4, %5 : vector<8x2x32xf32>
    %c0_7 = arith.constant 0 : index
    %c0_8 = arith.constant 0 : index
    %c0_9 = arith.constant 0 : index
    %7 = vector.load %arg4[%c0_7, %c0_8, %c0_9] : memref<8x2x32xf32, #tpu.memory_space<vmem>>, vector<8x2x32xf32>
    tpu.vector_store %arg4[%c0_7, %c0_8, %c0_9], %6 {strides = array<i32>} : memref<8x2x32xf32, #tpu.memory_space<vmem>>, vector<8x2x32xf32>,
    return
  }
  func.func @transform_0(%arg0: i32) -> (i32, i32, i32) {
    %c0_i32 = arith.constant 0 : i32
    %c0_i32_0 = arith.constant 0 : i32
    %c0_i32_1 = arith.constant 0 : i32
    return %arg0, %c0_i32, %c0_i32_0 : i32, i32, i32
  }
  func.func @transform_1(%arg0: i32) -> (i32, i32) {
    %c0_i32 = arith.constant 0 : i32
    %c0_i32_0 = arith.constant 0 : i32
    return %arg0, %c0_i32 : i32, i32
  }
  func.func @transform_2(%arg0: i32) -> (i32, i32, i32) {
    %c0_i32 = arith.constant 0 : i32
    %c0_i32_0 = arith.constant 0 : i32
    %c0_i32_1 = arith.constant 0 : i32
    return %arg0, %c0_i32, %c0_i32_0 : i32, i32, i32
  }
  func.func @transform_3(%arg0: i32) -> (i32, i32, i32) {
    %c0_i32 = arith.constant 0 : i32
    %c0_i32_0 = arith.constant 0 : i32
    %c0_i32_1 = arith.constant 0 : i32
    return %arg0, %c0_i32, %c0_i32_0 : i32, i32, i32
  }
}

</mosaic_0001>

<llo_original>
// kernel: tpu_custom_call.1
$region0: #{tpu_custom_call.1}
  #allocation0 [shape = 'u32[]', space=smem, size = 0x4, offset = 0x4, fixed_abs, tag = 'smem constant byte address 0x4 - core index']
  #allocation1 [shape = 'u32[144,128]{1,0:T(1,128)}', space=vmem, size = 0x12000, scoped, tag = 'internal scratch']
  %s0 = inlined_call_operand.hbm [shape: f32[16,2,32], index: 0, kind: input, shape index: {}]
  %s1 = inlined_call_operand.hbm [shape: f32[16,32], index: 1, kind: input, shape index: {}]
  %s2 = inlined_call_operand.hbm [shape: f32[16,2,32], index: 2, kind: input, shape index: {}]
  %s3 = inlined_call_operand.hbm [shape: f32[16,2,32], index: 3, kind: output, shape index: {}]
  %s4 = sld [smem:[#allocation0]]
  $region57: #{tpu_custom_call.1} parent=0
    _
  %s6 = ssub.s32 1, %s4
  %s7 = scalar_select 0, %s6, %s4
  $region1: #{tpu_custom_call.1} parent=0
    #allocation2 [shape = 'u8[16384]{0}', space=vmem, size = 0x4000, scoped, tag = 'input window, operand 0']
    #allocation3 [shape = 's32[2]{0}', space=sflag, size = 0x8, scoped, tag = 'scoped memory for tpu_custom_call.1']
    #allocation4 [shape = 's32[2]{0}', space=sflag, size = 0x8, scoped, tag = 'scoped memory for tpu_custom_call.1']
    #allocation5 [shape = 'u8[8192]{0}', space=vmem, size = 0x2000, scoped, tag = 'input window, operand 1']
    #allocation6 [shape = 's32[2]{0}', space=sflag, size = 0x8, scoped, tag = 'scoped memory for tpu_custom_call.1']
    #allocation7 [shape = 'u8[16384]{0}', space=vmem, size = 0x4000, scoped, tag = 'input window, operand 2']
    #allocation8 [shape = 'u8[16384]{0}', space=vmem, size = 0x4000, scoped, tag = 'output window, operand 0']
    %8 = vsyncpa [#allocation3], 0
    %s9 = scalar_lea.sflag [#allocation3], 1
    %10 = vsyncpa %s9, 0
    %11 = vsyncpa [#allocation6], 0
    %s12 = scalar_lea.sflag [#allocation6], 1
    %13 = vsyncpa %s12, 0
    %14 = vsyncpa [#allocation4], 0
    %s15 = scalar_lea.sflag [#allocation4], 1
    %16 = vsyncpa %s15, 0
    loop: start=0, step=1, limit=4
    $region2: #{tpu_custom_call.1} parent=1 // loop_pre_header
      _
    $region3: #{tpu_custom_call.1} parent=1 // loop_header
      %s18 = sphi 0, %s22
      %p19 = scmp.ge.s32.totalorder %s18, 4
      %s28 = sphi 0, %s30
      %s31 = sphi 0, %s28
      %s32 = sphi 0, %s31
      %s48 = sphi 0, %s32
      %s54 = sphi 0, %s56
      %s57 = sphi 0, %s54
      %s58 = sphi 0, %s57
      %s74 = sphi 0, %s58
      %s80 = sphi 0, %s82
      %s83 = sphi 0, %s80
      %s84 = sphi 0, %s83
      %s100 = sphi 0, %s84
      %s106 = sphi 0, %s108
      %s109 = sphi 0, %s106
      %s110 = sphi 0, %s109
      %s126 = sphi 0, %s110
    $region4: #{tpu_custom_call.1} parent=1 // loop_header_branch
      %21 = sbr.rel (%p19) target = $region8
    $region5: #{tpu_custom_call.1} parent=1 // loop_body
      %s23 = ssub.s32 %s18, 1
      %s24 = ssub.s32 %s18, 2
      %s25 = sadd.s32 %s18, 1
      %s26 = ssub.s32 %s18, %s25
      %p27 = scmp.eq.s32.totalorder %s26, 0
      %s29 = sadd.s32 %s28, 1
      %s30 = scalar_select %p27, %s28, %s29
      %p33 = pneg %p27
      %p34 = scmp.eq.s32.totalorder %s18, 1
      %p35 = por %p33, %p34
      %p36 = scmp.ne.s32.totalorder %s28, %s31
      %p37 = scmp.eq.s32.totalorder %s18, 0
      %p38 = por %p36, %p37
      %p39 = scmp.ne.s32.totalorder %s28, %s31
      %p40 = scmp.eq.s32.totalorder %s23, 1
      %p41 = por %p39, %p40
      %p42 = scmp.ne.s32.totalorder %s31, %s32
      %p43 = scmp.eq.s32.totalorder %s23, 0
      %p44 = por %p42, %p43
      %p45 = scmp.ne.s32.totalorder %s31, %s32
      %p46 = scmp.eq.s32.totalorder %s24, 1
      %p47 = por %p45, %p46
      %p49 = scmp.ne.s32.totalorder %s32, %s48
      %p50 = scmp.eq.s32.totalorder %s24, 0
      %p51 = por %p49, %p50
      %s52 = ssub.s32 %s18, %s25
      %p53 = scmp.eq.s32.totalorder %s52, 0
      %s55 = sadd.s32 %s54, 1
      %s56 = scalar_select %p53, %s54, %s55
      %p59 = pneg %p53
      %p60 = scmp.eq.s32.totalorder %s18, 1
      %p61 = por %p59, %p60
      %p62 = scmp.ne.s32.totalorder %s54, %s57
      %p63 = scmp.eq.s32.totalorder %s18, 0
      %p64 = por %p62, %p63
      %p65 = scmp.ne.s32.totalorder %s54, %s57
      %p66 = scmp.eq.s32.totalorder %s23, 1
      %p67 = por %p65, %p66
      %p68 = scmp.ne.s32.totalorder %s57, %s58
      %p69 = scmp.eq.s32.totalorder %s23, 0
      %p70 = por %p68, %p69
      %p71 = scmp.ne.s32.totalorder %s57, %s58
      %p72 = scmp.eq.s32.totalorder %s24, 1
      %p73 = por %p71, %p72
      %p75 = scmp.ne.s32.totalorder %s58, %s74
      %p76 = scmp.eq.s32.totalorder %s24, 0
      %p77 = por %p75, %p76
      %s78 = ssub.s32 %s18, %s25
      %p79 = scmp.eq.s32.totalorder %s78, 0
      %s81 = sadd.s32 %s80, 1
      %s82 = scalar_select %p79, %s80, %s81
      %p85 = pneg %p79
      %p86 = scmp.eq.s32.totalorder %s18, 1
      %p87 = por %p85, %p86
      %p88 = scmp.ne.s32.totalorder %s80, %s83
      %p89 = scmp.eq.s32.totalorder %s18, 0
      %p90 = por %p88, %p89
      %p91 = scmp.ne.s32.totalorder %s80, %s83
      %p92 = scmp.eq.s32.totalorder %s23, 1
      %p93 = por %p91, %p92
      %p94 = scmp.ne.s32.totalorder %s83, %s84
      %p95 = scmp.eq.s32.totalorder %s23, 0
      %p96 = por %p94, %p95
      %p97 = scmp.ne.s32.totalorder %s83, %s84
      %p98 = scmp.eq.s32.totalorder %s24, 1
      %p99 = por %p97, %p98
      %p101 = scmp.ne.s32.totalorder %s84, %s100
      %p102 = scmp.eq.s32.totalorder %s24, 0
      %p103 = por %p101, %p102
      %s104 = ssub.s32 %s18, %s25
      %p105 = scmp.eq.s32.totalorder %s104, 0
      %s107 = sadd.s32 %s106, 1
      %s108 = scalar_select %p105, %s106, %s107
      %p111 = pneg %p105
      %p112 = scmp.eq.s32.totalorder %s18, 1
      %p113 = por %p111, %p112
      %p114 = scmp.ne.s32.totalorder %s106, %s109
      %p115 = scmp.eq.s32.totalorder %s18, 0
      %p116 = por %p114, %p115
      %p117 = scmp.ne.s32.totalorder %s106, %s109
      %p118 = scmp.eq.s32.totalorder %s23, 1
      %p119 = por %p117, %p118
      %p120 = scmp.ne.s32.totalorder %s109, %s110
      %p121 = scmp.eq.s32.totalorder %s23, 0
      %p122 = por %p120, %p121
      %p123 = scmp.ne.s32.totalorder %s109, %s110
      %p124 = scmp.eq.s32.totalorder %s24, 1
      %p125 = por %p123, %p124
      %p127 = scmp.ne.s32.totalorder %s110, %s126
      %p128 = scmp.eq.s32.totalorder %s24, 0
      %p129 = por %p127, %p128
      %p130 = scmp.le.s32.totalorder 1, %s18
      %p131 = scmp.lt.s32.totalorder %s18, 3
      %p132 = pnand %p130, %p131
      %p133 = pneg %p132
      // Predicated region
      $region9: #{tpu_custom_call.1} parent=5 // pred_check
        _
      $region10: #{tpu_custom_call.1} parent=5 // pred_check_branch
        %135 = sbr.rel (%p132) target = $region12
      $region11: #{tpu_custom_call.1} parent=5 // pred_region
        %s136 = ssub.s32 %s18, 1
      $region12: #{tpu_custom_call.1} parent=5 // pred_fallthru
        _
      %p137 = scmp.lt.s32.totalorder %s18, 2
      // Predicated region
      $region13: #{tpu_custom_call.1} parent=5 // pred_check
        %p138 = pneg %p137
      $region14: #{tpu_custom_call.1} parent=5 // pred_check_branch
        %140 = sbr.rel (%p138) target = $region16
      $region15: #{tpu_custom_call.1} parent=5 // pred_region
        // Predicated region
        $region17: #{tpu_custom_call.1} parent=15 // pred_check
          %p141 = pneg %p38
        $region18: #{tpu_custom_call.1} parent=15 // pred_check_branch
          %143 = sbr.rel (%p141) target = $region20
        $region19: #{tpu_custom_call.1} parent=15 // pred_region
          %s144 = sand.u32 %s28, 1
          %s145 = scalar_lea.sflag [#allocation3], %s144
          %s146 = sand.u32 %s28, 1
          %s147 = smul.addr %s146, 16
          %s148 = scalar_lea.vmem [#allocation2], %s147
          %s149 = smul.u32 8, %s18
          %s151 = ssub.s32 256, 256
          %152 = vsyncadd %s145, %s151
          %s153 = smul.addr %s149, 32
          %s154 = scalar_lea.hbm %s0, %s153
          %s155 = sshll.u32 %s148, 4
          %s156 = int_to_ptr.vmem [resolvable:$true] %s155
          %161 = dma.hbm_to_vmem [thread:$0]  %s154, 256, %s156, %s145, 32, 32, 2
        $region20: #{tpu_custom_call.1} parent=15 // pred_fallthru
          _
        // Predicated region
        $region21: #{tpu_custom_call.1} parent=15 // pred_check
          %p162 = pneg %p64
        $region22: #{tpu_custom_call.1} parent=15 // pred_check_branch
          %164 = sbr.rel (%p162) target = $region24
        $region23: #{tpu_custom_call.1} parent=15 // pred_region
          %s165 = sand.u32 %s18, 1
          %s166 = scalar_lea.sflag [#allocation6], %s165
          %s167 = sand.u32 %s54, 1
          %s168 = smul.addr %s167, 8
          %s169 = scalar_lea.vmem [#allocation5], %s168
          %s171 = ssub.s32 128, 128
          %172 = vsyncadd %s166, %s171
          %s173 = smul.addr %s18, 128
          %s174 = scalar_lea.hbm %s1, %s173
          %s176 = sshll.u32 %s169, 4
          %s177 = int_to_ptr.vmem [resolvable:$true] %s176
          %179 = dma.hbm_to_vmem [thread:$0]  %s174, 128, %s177, %s166
        $region24: #{tpu_custom_call.1} parent=15 // pred_fallthru
          _
        // Predicated region
        $region25: #{tpu_custom_call.1} parent=15 // pred_check
          %p180 = pneg %p90
        $region26: #{tpu_custom_call.1} parent=15 // pred_check_branch
          %182 = sbr.rel (%p180) target = $region28
        $region27: #{tpu_custom_call.1} parent=15 // pred_region
          %s183 = sand.u32 %s18, 1
          %s184 = scalar_lea.sflag [#allocation6], %s183
          %s185 = sand.u32 %s80, 1
          %s186 = smul.addr %s185, 16
          %s187 = scalar_lea.vmem [#allocation7], %s186
          %s188 = smul.u32 8, %s18
          %s190 = ssub.s32 256, 256
          %191 = vsyncadd %s184, %s190
          %s192 = smul.addr %s188, 32
          %s193 = scalar_lea.hbm %s2, %s192
          %s194 = sshll.u32 %s187, 4
          %s195 = int_to_ptr.vmem [resolvable:$true] %s194
          %200 = dma.hbm_to_vmem [thread:$0]  %s193, 256, %s195, %s184, 32, 32, 2
        $region28: #{tpu_custom_call.1} parent=15 // pred_fallthru
          _
      $region16: #{tpu_custom_call.1} parent=5 // pred_fallthru
        _
      %p201 = scmp.le.s32.totalorder 1, %s18
      %p202 = scmp.lt.s32.totalorder %s18, 3
      %p203 = pnand %p201, %p202
      %p204 = pneg %p203
      // Predicated region
      $region29: #{tpu_custom_call.1} parent=5 // pred_check
        _
      $region30: #{tpu_custom_call.1} parent=5 // pred_check_branch
        %206 = sbr.rel (%p203) target = $region32
      $region31: #{tpu_custom_call.1} parent=5 // pred_region
        %s207 = ssub.s32 %s18, 1
        %s208 = sand.u32 %s31, 1
        %s209 = scalar_lea.sflag [#allocation3], %s208
        %s210 = sand.u32 %s31, 1
        %s211 = smul.addr %s210, 16
        %s212 = scalar_lea.vmem [#allocation2], %s211
        // Predicated region
        $region33: #{tpu_custom_call.1} parent=31 // pred_check
          %p213 = pneg %p44
        $region34: #{tpu_custom_call.1} parent=31 // pred_check_branch
          %215 = sbr.rel (%p213) target = $region36
        $region35: #{tpu_custom_call.1} parent=31 // pred_region
          %216 = dma.done %s209, 256
        $region36: #{tpu_custom_call.1} parent=31 // pred_fallthru
          _
        %s217 = sand.u32 %s23, 1
        %s218 = scalar_lea.sflag [#allocation6], %s217
        %s219 = sand.u32 %s57, 1
        %s220 = smul.addr %s219, 8
        %s221 = scalar_lea.vmem [#allocation5], %s220
        // Predicated region
        $region37: #{tpu_custom_call.1} parent=31 // pred_check
          %p222 = pneg %p70
        $region38: #{tpu_custom_call.1} parent=31 // pred_check_branch
          %224 = sbr.rel (%p222) target = $region40
        $region39: #{tpu_custom_call.1} parent=31 // pred_region
          %225 = dma.done %s218, 128
        $region40: #{tpu_custom_call.1} parent=31 // pred_fallthru
          _
        %s226 = sand.u32 %s23, 1
        %s227 = scalar_lea.sflag [#allocation6], %s226
        %s228 = sand.u32 %s83, 1
        %s229 = smul.addr %s228, 16
        %s230 = scalar_lea.vmem [#allocation7], %s229
        // Predicated region
        $region41: #{tpu_custom_call.1} parent=31 // pred_check
          %p231 = pneg %p96
        $region42: #{tpu_custom_call.1} parent=31 // pred_check_branch
          %233 = sbr.rel (%p231) target = $region44
        $region43: #{tpu_custom_call.1} parent=31 // pred_region
          %234 = dma.done %s227, 256
        $region44: #{tpu_custom_call.1} parent=31 // pred_fallthru
          _
        %s235 = sand.u32 %s31, 1
        %s236 = scalar_lea.sflag [#allocation3], %s235
        %s237 = sand.u32 %s31, 1
        %s238 = smul.addr %s237, 16
        %s239 = scalar_lea.vmem [#allocation2], %s238
        %p240 = pneg %p44
        %p241 = pneg %p41
        %s242 = sand.u32 %s23, 1
        %s243 = scalar_lea.sflag [#allocation6], %s242
        %s244 = sand.u32 %s57, 1
        %s245 = smul.addr %s244, 8
        %s246 = scalar_lea.vmem [#allocation5], %s245
        %p247 = pneg %p70
        %p248 = pneg %p67
        %s249 = sand.u32 %s23, 1
        %s250 = scalar_lea.sflag [#allocation6], %s249
        %s251 = sand.u32 %s83, 1
        %s252 = smul.addr %s251, 16
        %s253 = scalar_lea.vmem [#allocation7], %s252
        %p254 = pneg %p96
        %p255 = pneg %p93
        %p256 = pneg %p122
        %p257 = pneg %p119
        %s258 = sand.u32 %s109, 1
        %s259 = scalar_lea.sflag [#allocation4], %s258
        %s260 = sand.u32 %s109, 1
        %s261 = smul.addr %s260, 16
        %s262 = scalar_lea.vmem [#allocation8], %s261
        %s263 = smul.u32 8, %s23
        %s264 = smul.u32 8, %s23
        %s265 = smul.u32 8, %s23
        %v266 = vld [vmem:[%s212] sm:$0x3]
        %v267 = vld [vmem:[%s212 + $0x2] sm:$0x3]
        %v268 = vld [vmem:[%s212 + $0x4] sm:$0x3]
        %v269 = vld [vmem:[%s212 + $0x6] sm:$0x3]
        %v270 = vld [vmem:[%s212 + $0x8] sm:$0x3]
        %v271 = vld [vmem:[%s212 + $0xa] sm:$0x3]
        %v272 = vld [vmem:[%s212 + $0xc] sm:$0x3]
        %v273 = vld [vmem:[%s212 + $0xe] sm:$0x3]
        %v274 = vld [vmem:[%s221] sm:$0xff]
        %v276 = vcombine.high %v274, %v274
        %v278 = vunpack.c.l.s4 1966171168
        %v279 = vunpack.c.0.s8 %v278
        %v280 = vlaneseq
        %v281 = vshrl.u32 %v280, 7
        %v282 = vsub.s32 %v279, %v281
        %v283 = vrot.slane %v274, %v282
        %v285 = vunpack.c.l.s4 1966171168
        %v286 = vunpack.c.0.s8 %v285
        %v287 = vlaneseq
        %v288 = vshrl.u32 %v287, 7
        %v289 = vsub.s32 %v286, %v288
        %v290 = vrot.slane %v276, %v289
        %v291 = vcombine.high %v283, %v283
        %v292 = vcombine.high %v290, %v290
        %v294 = vunpack.c.l.s4 1966171168
        %v295 = vunpack.c.0.s8 %v294
        %v296 = vlaneseq
        %v297 = vshrl.u32 %v296, 7
        %v298 = vsub.s32 %v295, %v297
        %v299 = vrot.slane %v283, %v298
        %v301 = vunpack.c.l.s4 1966171168
        %v302 = vunpack.c.0.s8 %v301
        %v303 = vlaneseq
        %v304 = vshrl.u32 %v303, 7
        %v305 = vsub.s32 %v302, %v304
        %v306 = vrot.slane %v290, %v305
        %v308 = vunpack.c.l.s4 1966171168
        %v309 = vunpack.c.0.s8 %v308
        %v310 = vlaneseq
        %v311 = vshrl.u32 %v310, 7
        %v312 = vsub.s32 %v309, %v311
        %v313 = vrot.slane %v291, %v312
        %v315 = vunpack.c.l.s4 1966171168
        %v316 = vunpack.c.0.s8 %v315
        %v317 = vlaneseq
        %v318 = vshrl.u32 %v317, 7
        %v319 = vsub.s32 %v316, %v318
        %v320 = vrot.slane %v292, %v319
        %v321 = vcombine.high %v299, %v299
        %v322 = vcombine.high %v306, %v306
        %v323 = vcombine.high %v313, %v313
        %v324 = vcombine.high %v320, %v320
        %v325 = vlaneseq
        %v326 = vshrl.u32 %v325, 7
        %v327 = vsub.s32 0, %v326
        %v328 = vrot.slane %v299, %v327
        %v329 = vlaneseq
        %v330 = vshrl.u32 %v329, 7
        %v331 = vsub.s32 0, %v330
        %v332 = vrot.slane %v313, %v331
        %v333 = vlaneseq
        %v334 = vshrl.u32 %v333, 7
        %v335 = vsub.s32 0, %v334
        %v336 = vrot.slane %v321, %v335
        %v337 = vlaneseq
        %v338 = vshrl.u32 %v337, 7
        %v339 = vsub.s32 0, %v338
        %v340 = vrot.slane %v323, %v339
        %v341 = vlaneseq
        %v342 = vshrl.u32 %v341, 7
        %v343 = vsub.s32 0, %v342
        %v344 = vrot.slane %v306, %v343
        %v345 = vlaneseq
        %v346 = vshrl.u32 %v345, 7
        %v347 = vsub.s32 0, %v346
        %v348 = vrot.slane %v320, %v347
        %v349 = vlaneseq
        %v350 = vshrl.u32 %v349, 7
        %v351 = vsub.s32 0, %v350
        %v352 = vrot.slane %v322, %v351
        %v353 = vlaneseq
        %v354 = vshrl.u32 %v353, 7
        %v355 = vsub.s32 0, %v354
        %v356 = vrot.slane %v324, %v355
        %v365 = vadd.f32 %v266, %v328
        %v366 = vadd.f32 %v267, %v332
        %v367 = vadd.f32 %v268, %v336
        %v368 = vadd.f32 %v269, %v340
        %v369 = vadd.f32 %v270, %v344
        %v370 = vadd.f32 %v271, %v348
        %v371 = vadd.f32 %v272, %v352
        %v372 = vadd.f32 %v273, %v356
        %v373 = vld [vmem:[%s230] sm:$0x3]
        %v374 = vld [vmem:[%s230 + $0x2] sm:$0x3]
        %v375 = vld [vmem:[%s230 + $0x4] sm:$0x3]
        %v376 = vld [vmem:[%s230 + $0x6] sm:$0x3]
        %v377 = vld [vmem:[%s230 + $0x8] sm:$0x3]
        %v378 = vld [vmem:[%s230 + $0xa] sm:$0x3]
        %v379 = vld [vmem:[%s230 + $0xc] sm:$0x3]
        %v380 = vld [vmem:[%s230 + $0xe] sm:$0x3]
        %v381 = vmul.f32 %v365, %v373
        %v382 = vmul.f32 %v366, %v374
        %v383 = vmul.f32 %v367, %v375
        %v384 = vmul.f32 %v368, %v376
        %v385 = vmul.f32 %v369, %v377
        %v386 = vmul.f32 %v370, %v378
        %v387 = vmul.f32 %v371, %v379
        %v388 = vmul.f32 %v372, %v380
        %vm389 = vcmask 254976
        %390 = vst.msk [vmem:[%s262] sm:$0x3] %vm389, %v381
        %391 = vst.msk [vmem:[%s262 + $0x2] sm:$0x3] %vm389, %v382
        %392 = vst.msk [vmem:[%s262 + $0x4] sm:$0x3] %vm389, %v383
        %393 = vst.msk [vmem:[%s262 + $0x6] sm:$0x3] %vm389, %v384
        %394 = vst.msk [vmem:[%s262 + $0x8] sm:$0x3] %vm389, %v385
        %395 = vst.msk [vmem:[%s262 + $0xa] sm:$0x3] %vm389, %v386
        %396 = vst.msk [vmem:[%s262 + $0xc] sm:$0x3] %vm389, %v387
        %397 = vst.msk [vmem:[%s262 + $0xe] sm:$0x3] %vm389, %v388
        %s398 = sand.u32 %s109, 1
        %s399 = scalar_lea.sflag [#allocation4], %s398
        %s400 = sand.u32 %s109, 1
        %s401 = smul.addr %s400, 16
        %s402 = scalar_lea.vmem [#allocation8], %s401
        // Predicated region
        $region45: #{tpu_custom_call.1} parent=31 // pred_check
          %p403 = pneg %p119
        $region46: #{tpu_custom_call.1} parent=31 // pred_check_branch
          %405 = sbr.rel (%p403) target = $region48
        $region47: #{tpu_custom_call.1} parent=31 // pred_region
          %s406 = smul.u32 8, %s23
          %s408 = ssub.s32 256, 256
          %409 = vsyncadd %s399, %s408
          %s410 = smul.addr %s406, 32
          %s411 = scalar_lea.hbm %s3, %s410
          %s412 = sshll.u32 %s402, 4
          %s413 = int_to_ptr.vmem [resolvable:$true] %s412
          %418 = dma.vmem_to_hbm [thread:$0]  %s413, 256, %s411, %s399, 32, 32, 2
        $region48: #{tpu_custom_call.1} parent=31 // pred_fallthru
          _
      $region32: #{tpu_custom_call.1} parent=5 // pred_fallthru
        _
      %p419 = scmp.le.s32.totalorder 2, %s18
      // Predicated region
      $region49: #{tpu_custom_call.1} parent=5 // pred_check
        %p420 = pneg %p419
      $region50: #{tpu_custom_call.1} parent=5 // pred_check_branch
        %422 = sbr.rel (%p420) target = $region52
      $region51: #{tpu_custom_call.1} parent=5 // pred_region
        %s423 = ssub.s32 %s18, 2
        // Predicated region
        $region53: #{tpu_custom_call.1} parent=51 // pred_check
          %p424 = pneg %p125
        $region54: #{tpu_custom_call.1} parent=51 // pred_check_branch
          %426 = sbr.rel (%p424) target = $region56
        $region55: #{tpu_custom_call.1} parent=51 // pred_region
          %s427 = sand.u32 %s110, 1
          %s428 = scalar_lea.sflag [#allocation4], %s427
          %s429 = sand.u32 %s110, 1
          %s430 = smul.addr %s429, 16
          %s431 = scalar_lea.vmem [#allocation8], %s430
          %432 = dma.done %s428, 256
        $region56: #{tpu_custom_call.1} parent=51 // pred_fallthru
          _
      $region52: #{tpu_custom_call.1} parent=5 // pred_fallthru
        _
    $region6: #{tpu_custom_call.1} parent=1 // loop_footer
      %s22 = sadd.s32 1, %s18
    $region7: #{tpu_custom_call.1} parent=1 // loop_footer_branch
      %17 = sbr.rel target = $region3
    $region8: #{tpu_custom_call.1} parent=1 // loop_exit
      _
    %433 = vsyncpa [#allocation3], 1
    %s434 = scalar_lea.sflag [#allocation3], 1
    %435 = vsyncpa %s434, 1
    %436 = vsyncpa [#allocation6], 1
    %s437 = scalar_lea.sflag [#allocation6], 1
    %438 = vsyncpa %s437, 1
    %439 = vsyncpa [#allocation4], 1
    %s440 = scalar_lea.sflag [#allocation4], 1
    %441 = vsyncpa %s440, 1

</llo_original>
